<compile_context>
chip_gen: v5e
topology: v5e:2x2
jax: 0.10.0
libtpu: 0.0.40
codegen_flags: <defaults>
</compile_context>

<pallas_src>
import jax
import jax.numpy as jnp
from jax.experimental import pallas as pl
from jax.experimental.pallas import tpu as pltpu


def mlp_kernel(xT_ref,
               w1_ref, b1_ref,
               w2_ref, b2_ref,
               w3_ref, b3_ref,
               w4_ref, b4_ref,
               w5_ref, b5_ref,
               o_ref):
    # TODO(synk): nn.Dropout is implemented as inference-mode identity; training
    # semantics would need pltpu.prng_seed + pltpu.stateful_bernoulli.
    # Activations are [features, TB] (batch on lanes).
    h = xT_ref[...]                                                   # bf16 [cols, TB]

    h = jnp.dot(w1_ref[...], h, preferred_element_type=jnp.float32) + b1_ref[...]
    h = jnp.maximum(h, 0.0).astype(jnp.bfloat16)                      # [30, TB]

    h = jnp.dot(w2_ref[...], h, preferred_element_type=jnp.float32) + b2_ref[...]
    h = jnp.maximum(h, 0.0).astype(jnp.bfloat16)                      # [5, TB]

    h = jnp.dot(w3_ref[...], h, preferred_element_type=jnp.float32) + b3_ref[...]
    h = jnp.maximum(h, 0.0).astype(jnp.bfloat16)                      # [5, TB]

    h = jnp.dot(w4_ref[...], h, preferred_element_type=jnp.float32) + b4_ref[...]
    h = jnp.maximum(h, 0.0).astype(jnp.bfloat16)                      # [5, TB]

    out = jnp.dot(w5_ref[...], h, preferred_element_type=jnp.float32) + b5_ref[...]
    o_ref[...] = out.astype(o_ref.dtype)                              # [1, TB]


def init_linear(key, fan_in, fan_out):
    """PyTorch nn.Linear default init: U(-1/sqrt(fan_in), 1/sqrt(fan_in)).

    Weight is kept in PyTorch layout [out, in]; bias is [out, 1] so it
    broadcasts over the lane (batch) axis inside the kernel.
    """
    kw, kb = jax.random.split(key)
    bound = 1.0 / jnp.sqrt(jnp.float32(fan_in))
    w = jax.random.uniform(kw, (fan_out, fan_in), jnp.float32, -bound, bound)
    b = jax.random.uniform(kb, (fan_out, 1), jnp.float32, -bound, bound)
    return w, b


def make_params(cols, seed=0):
    key = jax.random.PRNGKey(seed)
    keys = jax.random.split(key, 5)
    dims = [(cols, 30), (30, 5), (5, 5), (5, 5), (5, 1)]
    params = []
    for k, (fi, fo) in zip(keys, dims):
        params.extend(init_linear(k, fi, fo))
    return params  # [w1, b1, ..., w5, b5]  (f32, PyTorch layout)


def net_forward(x, params, tb=2048):
    batch, cols = x.shape

    # Lane-dense tile: multiple of 128, big enough to amortize the ~0.35 us
    # per-grid-step overhead, but still tiny vs the requested VMEM limit
    # (cols x tb x 2B per buffer, double-buffered).
    tb = int(min(tb, max(128, pl.next_power_of_2(batch))))
    padded = pl.cdiv(batch, tb) * tb

    # Batch-on-lanes layout + bf16 streaming input (zero-padded tail columns
    # are computed and then sliced off, so no masking is needed in-kernel).
    xT = jnp.zeros((cols, padded), jnp.bfloat16)
    xT = xT.at[:, :batch].set(x.T.astype(jnp.bfloat16))

    # Weights bf16 (MXU inputs), biases f32 (added post-MXU in f32).
    kparams = [p.astype(jnp.bfloat16) if i % 2 == 0 else p
               for i, p in enumerate(params)]

    in_specs = [pl.BlockSpec((cols, tb), lambda i: (0, i))]
    in_specs += [pl.BlockSpec(p.shape, lambda i: (0, 0)) for p in kparams]

    flops = 2 * padded * (cols * 30 + 30 * 5 + 5 * 5 + 5 * 5 + 5 * 1)
    bytes_accessed = (int(xT.size) * 2
                      + sum(int(p.size) * p.dtype.itemsize for p in kparams)
                      + padded * 4)

    outT = pl.pallas_call(
        mlp_kernel,
        out_shape=jax.ShapeDtypeStruct((1, padded), jnp.float32),
        grid=(padded // tb,),
        in_specs=in_specs,
        out_specs=pl.BlockSpec((1, tb), lambda i: (0, i)),
        compiler_params=pltpu.CompilerParams(
            dimension_semantics=("parallel",),
            vmem_limit_bytes=32 * 1024 * 1024),
        cost_estimate=pl.CostEstimate(flops=flops,
                                      transcendentals=0,
                                      bytes_accessed=bytes_accessed),
    )(xT, *kparams)

    return outT[:, :batch].T  # [batch, 1] f32


def net_forward_ref(x, params):
    w1, b1, w2, b2, w3, b3, w4, b4, w5, b5 = params
    h = jnp.maximum(x @ w1.T + b1.T, 0.0)
    h = jnp.maximum(h @ w2.T + b2.T, 0.0)
    h = jnp.maximum(h @ w3.T + b3.T, 0.0)
    h = jnp.maximum(h @ w4.T + b4.T, 0.0)
    return h @ w5.T + b5.T


if __name__ == "__main__":
    batch, cols = 8, 16
    key = jax.random.PRNGKey(0)
    x = jax.random.normal(key, (batch, cols), jnp.float32)
    params = make_params(cols, seed=0)

    out = net_forward(x, params)
    out = jax.block_until_ready(out)

    ref = net_forward_ref(x, params)
    assert out.shape == (batch, 1), out.shape
    # bf16 inputs/weights vs f32 reference -> loose tolerance.
    assert jnp.allclose(out, ref, atol=3e-2, rtol=3e-2), (out, ref)
    print("KERNEL_OK")
</pallas_src>

<mosaic_0001>
module attributes {stable_mosaic.version = 11 : i64} {
  func.func @mlp_kernel(%arg0: i32, %arg1: memref<16x128xbf16, #tpu.memory_space<vmem>>, %arg2: memref<30x16xbf16, #tpu.memory_space<vmem>>, %arg3: memref<30x1xf32, #tpu.memory_space<vmem>>, %arg4: memref<5x30xbf16, #tpu.memory_space<vmem>>, %arg5: memref<5x1xf32, #tpu.memory_space<vmem>>, %arg6: memref<5x5xbf16, #tpu.memory_space<vmem>>, %arg7: memref<5x1xf32, #tpu.memory_space<vmem>>, %arg8: memref<5x5xbf16, #tpu.memory_space<vmem>>, %arg9: memref<5x1xf32, #tpu.memory_space<vmem>>, %arg10: memref<1x5xbf16, #tpu.memory_space<vmem>>, %arg11: memref<1x1xf32, #tpu.memory_space<vmem>>, %arg12: memref<1x128xf32, #tpu.memory_space<vmem>>) attributes {dimension_semantics = [#tpu.dimension_semantics<parallel>], iteration_bounds = array<i64: 1>, scalar_prefetch = 0 : i64, scratch_operands = 0 : i64, tpu.core_type = #tpu.core_type<tc>, window_params = [{transform_indices = @transform_0, window_bounds = array<i64: 16, 128>}, {pipeline_mode = #tpu.pipeline_mode<synchronous>, transform_indices = @transform_1, window_bounds = array<i64: 30, 16>}, {pipeline_mode = #tpu.pipeline_mode<synchronous>, transform_indices = @transform_2, window_bounds = array<i64: 30, 1>}, {pipeline_mode = #tpu.pipeline_mode<synchronous>, transform_indices = @transform_3, window_bounds = array<i64: 5, 30>}, {pipeline_mode = #tpu.pipeline_mode<synchronous>, transform_indices = @transform_4, window_bounds = array<i64: 5, 1>}, {pipeline_mode = #tpu.pipeline_mode<synchronous>, transform_indices = @transform_5, window_bounds = array<i64: 5, 5>}, {pipeline_mode = #tpu.pipeline_mode<synchronous>, transform_indices = @transform_6, window_bounds = array<i64: 5, 1>}, {pipeline_mode = #tpu.pipeline_mode<synchronous>, transform_indices = @transform_7, window_bounds = array<i64: 5, 5>}, {pipeline_mode = #tpu.pipeline_mode<synchronous>, transform_indices = @transform_8, window_bounds = array<i64: 5, 1>}, {pipeline_mode = #tpu.pipeline_mode<synchronous>, transform_indices = @transform_9, window_bounds = array<i64: 1, 5>}, {pipeline_mode = #tpu.pipeline_mode<synchronous>, transform_indices = @transform_10, window_bounds = array<i64: 1, 1>}, {transform_indices = @transform_11, window_bounds = array<i64: 1, 128>}]} {
    %c0 = arith.constant 0 : index
    %c0_0 = arith.constant 0 : index
    %0 = vector.load %arg1[%c0, %c0_0] : memref<16x128xbf16, #tpu.memory_space<vmem>>, vector<16x128xbf16>
    %c0_1 = arith.constant 0 : index
    %c0_2 = arith.constant 0 : index
    %1 = vector.load %arg2[%c0_1, %c0_2] : memref<30x16xbf16, #tpu.memory_space<vmem>>, vector<30x16xbf16>
    %cst = arith.constant dense<0.000000e+00> : vector<30x128xf32>
    %2 = tpu.matmul %1, %0, %cst {dimension_numbers = #tpu.dot_dimension_numbers<[1], [0], [0], [1], [0, 0, 1, 1], [], []>} : vector<30x16xbf16>, vector<16x128xbf16>, vector<30x128xf32> -> vector<30x128xf32>
    %c0_3 = arith.constant 0 : index
    %c0_4 = arith.constant 0 : index
    %3 = vector.load %arg3[%c0_3, %c0_4] : memref<30x1xf32, #tpu.memory_space<vmem>>, vector<30x1xf32>
    %4 = vector.broadcast %3 : vector<30x1xf32> to vector<30x128xf32>
    %5 = arith.addf %2, %4 : vector<30x128xf32>
    %cst_5 = arith.constant 0.000000e+00 : f32
    %6 = vector.broadcast %cst_5 : f32 to vector<30x128xf32>
    %7 = arith.maximumf %5, %6 : vector<30x128xf32>
    %8 = arith.truncf %7 : vector<30x128xf32> to vector<30x128xbf16>
    %c0_6 = arith.constant 0 : index
    %c0_7 = arith.constant 0 : index
    %9 = vector.load %arg4[%c0_6, %c0_7] : memref<5x30xbf16, #tpu.memory_space<vmem>>, vector<5x30xbf16>
    %cst_8 = arith.constant dense<0.000000e+00> : vector<5x128xf32>
    %10 = tpu.matmul %9, %8, %cst_8 {dimension_numbers = #tpu.dot_dimension_numbers<[1], [0], [0], [1], [0, 0, 1, 1], [], []>} : vector<5x30xbf16>, vector<30x128xbf16>, vector<5x128xf32> -> vector<5x128xf32>
    %c0_9 = arith.constant 0 : index
    %c0_10 = arith.constant 0 : index
    %11 = vector.load %arg5[%c0_9, %c0_10] : memref<5x1xf32, #tpu.memory_space<vmem>>, vector<5x1xf32>
    %12 = vector.broadcast %11 : vector<5x1xf32> to vector<5x128xf32>
    %13 = arith.addf %10, %12 : vector<5x128xf32>
    %cst_11 = arith.constant 0.000000e+00 : f32
    %14 = vector.broadcast %cst_11 : f32 to vector<5x128xf32>
    %15 = arith.maximumf %13, %14 : vector<5x128xf32>
    %16 = arith.truncf %15 : vector<5x128xf32> to vector<5x128xbf16>
    %c0_12 = arith.constant 0 : index
    %c0_13 = arith.constant 0 : index
    %17 = vector.load %arg6[%c0_12, %c0_13] : memref<5x5xbf16, #tpu.memory_space<vmem>>, vector<5x5xbf16>
    %cst_14 = arith.constant dense<0.000000e+00> : vector<5x128xf32>
    %18 = tpu.matmul %17, %16, %cst_14 {dimension_numbers = #tpu.dot_dimension_numbers<[1], [0], [0], [1], [0, 0, 1, 1], [], []>} : vector<5x5xbf16>, vector<5x128xbf16>, vector<5x128xf32> -> vector<5x128xf32>
    %c0_15 = arith.constant 0 : index
    %c0_16 = arith.constant 0 : index
    %19 = vector.load %arg7[%c0_15, %c0_16] : memref<5x1xf32, #tpu.memory_space<vmem>>, vector<5x1xf32>
    %20 = vector.broadcast %19 : vector<5x1xf32> to vector<5x128xf32>
    %21 = arith.addf %18, %20 : vector<5x128xf32>
    %cst_17 = arith.constant 0.000000e+00 : f32
    %22 = vector.broadcast %cst_17 : f32 to vector<5x128xf32>
    %23 = arith.maximumf %21, %22 : vector<5x128xf32>
    %24 = arith.truncf %23 : vector<5x128xf32> to vector<5x128xbf16>
    %c0_18 = arith.constant 0 : index
    %c0_19 = arith.constant 0 : index
    %25 = vector.load %arg8[%c0_18, %c0_19] : memref<5x5xbf16, #tpu.memory_space<vmem>>, vector<5x5xbf16>
    %cst_20 = arith.constant dense<0.000000e+00> : vector<5x128xf32>
    %26 = tpu.matmul %25, %24, %cst_20 {dimension_numbers = #tpu.dot_dimension_numbers<[1], [0], [0], [1], [0, 0, 1, 1], [], []>} : vector<5x5xbf16>, vector<5x128xbf16>, vector<5x128xf32> -> vector<5x128xf32>
    %c0_21 = arith.constant 0 : index
    %c0_22 = arith.constant 0 : index
    %27 = vector.load %arg9[%c0_21, %c0_22] : memref<5x1xf32, #tpu.memory_space<vmem>>, vector<5x1xf32>
    %28 = vector.broadcast %27 : vector<5x1xf32> to vector<5x128xf32>
    %29 = arith.addf %26, %28 : vector<5x128xf32>
    %cst_23 = arith.constant 0.000000e+00 : f32
    %30 = vector.broadcast %cst_23 : f32 to vector<5x128xf32>
    %31 = arith.maximumf %29, %30 : vector<5x128xf32>
    %32 = arith.truncf %31 : vector<5x128xf32> to vector<5x128xbf16>
    %c0_24 = arith.constant 0 : index
    %c0_25 = arith.constant 0 : index
    %33 = vector.load %arg10[%c0_24, %c0_25] : memref<1x5xbf16, #tpu.memory_space<vmem>>, vector<1x5xbf16>
    %cst_26 = arith.constant dense<0.000000e+00> : vector<1x128xf32>
    %34 = tpu.matmul %33, %32, %cst_26 {dimension_numbers = #tpu.dot_dimension_numbers<[1], [0], [0], [1], [0, 0, 1, 1], [], []>} : vector<1x5xbf16>, vector<5x128xbf16>, vector<1x128xf32> -> vector<1x128xf32>
    %c0_27 = arith.constant 0 : index
    %c0_28 = arith.constant 0 : index
    %35 = vector.load %arg11[%c0_27, %c0_28] : memref<1x1xf32, #tpu.memory_space<vmem>>, vector<1x1xf32>
    %36 = vector.broadcast %35 : vector<1x1xf32> to vector<1x128xf32>
    %37 = arith.addf %34, %36 : vector<1x128xf32>
    %c0_29 = arith.constant 0 : index
    %c0_30 = arith.constant 0 : index
    %38 = vector.load %arg12[%c0_29, %c0_30] : memref<1x128xf32, #tpu.memory_space<vmem>>, vector<1x128xf32>
    tpu.vector_store %arg12[%c0_29, %c0_30], %37 {strides = array<i32>} : memref<1x128xf32, #tpu.memory_space<vmem>>, vector<1x128xf32>,
    return
  }
  func.func @transform_0(%arg0: i32) -> (i32, i32) {
    %c0_i32 = arith.constant 0 : i32
    %c0_i32_0 = arith.constant 0 : i32
    return %c0_i32, %arg0 : i32, i32
  }
  func.func @transform_1(%arg0: i32) -> (i32, i32) {
    %c0_i32 = arith.constant 0 : i32
    %c0_i32_0 = arith.constant 0 : i32
    %c0_i32_1 = arith.constant 0 : i32
    return %c0_i32, %c0_i32_0 : i32, i32
  }
  func.func @transform_2(%arg0: i32) -> (i32, i32) {
    %c0_i32 = arith.constant 0 : i32
    %c0_i32_0 = arith.constant 0 : i32
    %c0_i32_1 = arith.constant 0 : i32
    return %c0_i32, %c0_i32_0 : i32, i32
  }
  func.func @transform_3(%arg0: i32) -> (i32, i32) {
    %c0_i32 = arith.constant 0 : i32
    %c0_i32_0 = arith.constant 0 : i32
    %c0_i32_1 = arith.constant 0 : i32
    return %c0_i32, %c0_i32_0 : i32, i32
  }
  func.func @transform_4(%arg0: i32) -> (i32, i32) {
    %c0_i32 = arith.constant 0 : i32
    %c0_i32_0 = arith.constant 0 : i32
    %c0_i32_1 = arith.constant 0 : i32
    return %c0_i32, %c0_i32_0 : i32, i32
  }
  func.func @transform_5(%arg0: i32) -> (i32, i32) {
    %c0_i32 = arith.constant 0 : i32
    %c0_i32_0 = arith.constant 0 : i32
    %c0_i32_1 = arith.constant 0 : i32
    return %c0_i32, %c0_i32_0 : i32, i32
  }
  func.func @transform_6(%arg0: i32) -> (i32, i32) {
    %c0_i32 = arith.constant 0 : i32
    %c0_i32_0 = arith.constant 0 : i32
    %c0_i32_1 = arith.constant 0 : i32
    return %c0_i32, %c0_i32_0 : i32, i32
  }
  func.func @transform_7(%arg0: i32) -> (i32, i32) {
    %c0_i32 = arith.constant 0 : i32
    %c0_i32_0 = arith.constant 0 : i32
    %c0_i32_1 = arith.constant 0 : i32
    return %c0_i32, %c0_i32_0 : i32, i32
  }
  func.func @transform_8(%arg0: i32) -> (i32, i32) {
    %c0_i32 = arith.constant 0 : i32
    %c0_i32_0 = arith.constant 0 : i32
    %c0_i32_1 = arith.constant 0 : i32
    return %c0_i32, %c0_i32_0 : i32, i32
  }
  func.func @transform_9(%arg0: i32) -> (i32, i32) {
    %c0_i32 = arith.constant 0 : i32
    %c0_i32_0 = arith.constant 0 : i32
    %c0_i32_1 = arith.constant 0 : i32
    return %c0_i32, %c0_i32_0 : i32, i32
  }
  func.func @transform_10(%arg0: i32) -> (i32, i32) {
    %c0_i32 = arith.constant 0 : i32
    %c0_i32_0 = arith.constant 0 : i32
    %c0_i32_1 = arith.constant 0 : i32
    return %c0_i32, %c0_i32_0 : i32, i32
  }
  func.func @transform_11(%arg0: i32) -> (i32, i32) {
    %c0_i32 = arith.constant 0 : i32
    %c0_i32_0 = arith.constant 0 : i32
    return %c0_i32, %arg0 : i32, i32
  }
}

</mosaic_0001>

<llo_original>
// kernel: tpu_custom_call.1
$region0: #{tpu_custom_call.1}
  #allocation0 [shape = 'u32[]', space=smem, size = 0x4, offset = 0x4, fixed_abs, tag = 'smem constant byte address 0x4 - core index']
  #allocation1 [shape = 'u32[72,128]{1,0:T(1,128)}', space=vmem, size = 0x9000, scoped, tag = 'internal scratch']
  #allocation2 [shape = 'f32[1,1]{1,0:T(1,128)S(1)}', space=vmem, size = 0x200, scoped, tag = 'scoped memory for tpu_custom_call.1']
  %s0 = inlined_call_operand.vmem [shape: bf16[16,128], index: 0, kind: input, shape index: {}]
  %s1 = inlined_call_operand.vmem [shape: bf16[30,16], index: 1, kind: input, shape index: {}]
  %s2 = inlined_call_operand.vmem [shape: f32[30,1], index: 2, kind: input, shape index: {}]
  %s3 = inlined_call_operand.vmem [shape: bf16[5,30], index: 3, kind: input, shape index: {}]
  %s4 = inlined_call_operand.vmem [shape: f32[5,1], index: 4, kind: input, shape index: {}]
  %s5 = inlined_call_operand.vmem [shape: bf16[5,5], index: 5, kind: input, shape index: {}]
  %s6 = inlined_call_operand.vmem [shape: f32[5,1], index: 6, kind: input, shape index: {}]
  %s7 = inlined_call_operand.vmem [shape: bf16[5,5], index: 7, kind: input, shape index: {}]
  %s8 = inlined_call_operand.vmem [shape: f32[5,1], index: 8, kind: input, shape index: {}]
  %s9 = inlined_call_operand.vmem [shape: bf16[1,5], index: 9, kind: input, shape index: {}]
  %s10 = inlined_call_operand.<no memory space> [shape: f32[1,1], index: 10, kind: input, shape index: {}]
  %s11 = inlined_call_operand.hbm [shape: f32[1,128], index: 11, kind: output, shape index: {}]
  %s12 = sld [smem:[#allocation0]]
  $region54: #{tpu_custom_call.1} parent=0
    _
  %s14 = ssub.s32 1, %s12
  %s15 = scalar_select 0, %s14, %s12
  %v16 = vstv %s10
  %17 = vst [vmem:[#allocation2] sm:$0x1] %v16
  $region1: #{tpu_custom_call.1} parent=0
    #allocation3 [shape = 'u8[512]{0}', space=vmem, size = 0x400, scoped, tag = 'output window, operand 0, single buffered']
    #allocation4 [shape = 's32[1]{0}', space=sflag, size = 0x4, scoped, tag = 'scoped memory for tpu_custom_call.1']
    %18 = vsyncpa [#allocation4], 0
    // Predicated region
    $region2: #{tpu_custom_call.1} parent=1 // pred_check
      _
    $region3: #{tpu_custom_call.1} parent=1 // pred_check_branch
      %20 = sbr.rel (0) target = $region5
    $region4: #{tpu_custom_call.1} parent=1 // pred_region
      _
    $region5: #{tpu_custom_call.1} parent=1 // pred_fallthru
      _
    // Predicated region
    $region6: #{tpu_custom_call.1} parent=1 // pred_check
      _
    $region7: #{tpu_custom_call.1} parent=1 // pred_check_branch
      %22 = sbr.rel (0) target = $region9
    $region8: #{tpu_custom_call.1} parent=1 // pred_region
      _
    $region9: #{tpu_custom_call.1} parent=1 // pred_fallthru
      _
    // Predicated region
    $region10: #{tpu_custom_call.1} parent=1 // pred_check
      _
    $region11: #{tpu_custom_call.1} parent=1 // pred_check_branch
      %24 = sbr.rel (0) target = $region13
    $region12: #{tpu_custom_call.1} parent=1 // pred_region
      _
    $region13: #{tpu_custom_call.1} parent=1 // pred_fallthru
      _
    // Predicated region
    $region14: #{tpu_custom_call.1} parent=1 // pred_check
      _
    $region15: #{tpu_custom_call.1} parent=1 // pred_check_branch
      %26 = sbr.rel (0) target = $region17
    $region16: #{tpu_custom_call.1} parent=1 // pred_region
      _
    $region17: #{tpu_custom_call.1} parent=1 // pred_fallthru
      _
    // Predicated region
    $region18: #{tpu_custom_call.1} parent=1 // pred_check
      _
    $region19: #{tpu_custom_call.1} parent=1 // pred_check_branch
      %28 = sbr.rel (0) target = $region21
    $region20: #{tpu_custom_call.1} parent=1 // pred_region
      _
    $region21: #{tpu_custom_call.1} parent=1 // pred_fallthru
      _
    // Predicated region
    $region22: #{tpu_custom_call.1} parent=1 // pred_check
      _
    $region23: #{tpu_custom_call.1} parent=1 // pred_check_branch
      %30 = sbr.rel (0) target = $region25
    $region24: #{tpu_custom_call.1} parent=1 // pred_region
      _
    $region25: #{tpu_custom_call.1} parent=1 // pred_fallthru
      _
    // Predicated region
    $region26: #{tpu_custom_call.1} parent=1 // pred_check
      _
    $region27: #{tpu_custom_call.1} parent=1 // pred_check_branch
      %32 = sbr.rel (0) target = $region29
    $region28: #{tpu_custom_call.1} parent=1 // pred_region
      _
    $region29: #{tpu_custom_call.1} parent=1 // pred_fallthru
      _
    // Predicated region
    $region30: #{tpu_custom_call.1} parent=1 // pred_check
      _
    $region31: #{tpu_custom_call.1} parent=1 // pred_check_branch
      %34 = sbr.rel (0) target = $region33
    $region32: #{tpu_custom_call.1} parent=1 // pred_region
      _
    $region33: #{tpu_custom_call.1} parent=1 // pred_fallthru
      _
    // Predicated region
    $region34: #{tpu_custom_call.1} parent=1 // pred_check
      _
    $region35: #{tpu_custom_call.1} parent=1 // pred_check_branch
      %36 = sbr.rel (0) target = $region37
    $region36: #{tpu_custom_call.1} parent=1 // pred_region
      _
    $region37: #{tpu_custom_call.1} parent=1 // pred_fallthru
      _
    // Predicated region
    $region38: #{tpu_custom_call.1} parent=1 // pred_check
      _
    $region39: #{tpu_custom_call.1} parent=1 // pred_check_branch
      %38 = sbr.rel (0) target = $region41
    $region40: #{tpu_custom_call.1} parent=1 // pred_region
      _
    $region41: #{tpu_custom_call.1} parent=1 // pred_fallthru
      _
    // Predicated region
    $region42: #{tpu_custom_call.1} parent=1 // pred_check
      _
    $region43: #{tpu_custom_call.1} parent=1 // pred_check_branch
      %40 = sbr.rel (0) target = $region45
    $region44: #{tpu_custom_call.1} parent=1 // pred_region
      _
    $region45: #{tpu_custom_call.1} parent=1 // pred_fallthru
      _
    %v42 = vld [vmem:[%s0] sm:$0xf]
    %v43 = vld [vmem:[%s0 + $0x4] sm:$0xf]
    %v44 = vld [vmem:[%s1] sm:$0xf]
    %v45 = vld [vmem:[%s1 + $0x4] sm:$0xf]
    %v46 = vld [vmem:[%s1 + $0x8] sm:$0xf]
    %v47 = vld [vmem:[%s1 + $0xc] sm:$0x7]
    %v48 = vld [vmem:[%s2] sm:$0xff]
    %v49 = vld [vmem:[%s2 + $0x8] sm:$0xff]
    %v50 = vld [vmem:[%s2 + $0x10] sm:$0xff]
    %v51 = vld [vmem:[%s2 + $0x18] sm:$0x3f]
    %53 = vset.pattern.permute.xlu0 0
    %54 = vperm.xlu0 %53, %v48
    %v55 = vpop.permute.xlu0 %54
    %58 = vset.pattern.permute.xlu0 0
    %59 = vperm.xlu0 %58, %v49
    %v60 = vpop.permute.xlu0 %59
    %63 = vset.pattern.permute.xlu0 0
    %64 = vperm.xlu0 %63, %v50
    %v65 = vpop.permute.xlu0 %64
    %68 = vset.pattern.permute.xlu0 0
    %69 = vperm.xlu0 %68, %v51
    %v70 = vpop.permute.xlu0 %69
    %v76 = vunpack.c.l.b16 %v44
    %v77 = vunpack.c.l.b16 %v45
    %v78 = vunpack.c.l.b16 %v46
    %v79 = vunpack.c.l.b16 %v47
    %v80 = vpack.c.b16 %v77, %v76
    %v81 = vpack.c.b16 %v79, %v78
    %v84 = vunpack.c.l.b16 %v42
    %v85 = vunpack.c.l.b16 %v43
    %v86 = vpack.c.b16 %v85, %v84
    %vm88 = vcmask 130048
    %v90 = vsel %vm88, %v80, 0
    %v93 = vsel %vm88, %v81, 0
    %95 = vmatpush.bf16.msra.mxu0 0
    %96 = vmatpush.bf16.msra.mxu0 0
    %97 = vmatpush.bf16.msra.mxu0 0
    %98 = vmatpush.bf16.msra.mxu0 0
    %99 = vmatpush.bf16.msra.mxu0 0
    %100 = vmatpush.bf16.msra.mxu0 0
    %101 = vmatpush.bf16.msra.mxu0 0
    %102 = vmatpush.bf16.msra.mxu0 %v86
    %103 = vmatmul.bf16.gmra.mxu0 %v90
    %v104 = vpop.f32.mrf.mxu0
    %v105 = vadd.f32 %v55, %v104
    %v106 = vpop.f32.mrf.mxu0
    %v107 = vadd.f32 %v60, %v106
    %108 = vmatmul.bf16.gmra.mxu0 %v93
    %v109 = vpop.f32.mrf.mxu0
    %v110 = vadd.f32 %v65, %v109
    %v111 = vpop.f32.mrf.mxu0
    %v112 = vadd.f32 %v70, %v111
    %113 = vdwg.mxu0
    %v114 = vmax.f32 %v105, 0.0
    %v115 = vmax.f32 %v107, 0.0
    %v116 = vmax.f32 %v110, 0.0
    %v117 = vmax.f32 %v112, 0.0
    %v118 = vpack.c.bf16 %v115, %v114
    %v119 = vpack.c.bf16 %v117, %v116
    %v120 = vld [vmem:[%s3] sm:$0x7]
    %v121 = vld [vmem:[%s4] sm:$0x1f]
    %123 = vset.pattern.permute.xlu0 0
    %124 = vperm.xlu0 %123, %v121
    %v125 = vpop.permute.xlu0 %124
    %vm127 = vcmask 244736
    %v129 = vsel %vm127, %v120, 0
    %vm131 = vcmask 1046528
    %v133 = vsel %vm131, %v119, 0
    %135 = vmatpush.bf16.msra.mxu0 0
    %136 = vmatpush.bf16.msra.mxu0 0
    %137 = vmatpush.bf16.msra.mxu0 0
    %138 = vmatpush.bf16.msra.mxu0 0
    %139 = vmatpush.bf16.msra.mxu0 0
    %140 = vmatpush.bf16.msra.mxu0 0
    %141 = vmatpush.bf16.msra.mxu0 %v133
    %142 = vmatpush.bf16.msra.mxu0 %v118
    %143 = vmatmul.bf16.gmra.mxu0 %v129
    %v144 = vpop.f32.mrf.mxu0
    %v145 = vadd.f32 %v125, %v144
    %v146 = vpop.f32.mrf.mxu0
    %147 = vdwg.mxu0
    %v148 = vmax.f32 %v145, 0.0
    %v149 = vpack.c.bf16 %v148, %v148
    %v150 = vld [vmem:[%s5] sm:$0x7]
    %v151 = vld [vmem:[%s6] sm:$0x1f]
    %153 = vset.pattern.permute.xlu0 0
    %154 = vperm.xlu0 %153, %v151
    %v155 = vpop.permute.xlu0 %154
    %vm157 = vcmask 39936
    %v159 = vsel %vm157, %v150, 0
    %vm161 = vcmask 1041408
    %vm162 = vcmask 1042432
    %v163 = vsel %vm161, 4294967295, 65535
    %v164 = vsel %vm162, %v163, 0
    %v166 = vand.u32 %v149, %v164
    %168 = vmatpush.bf16.msra.mxu0 0
    %169 = vmatpush.bf16.msra.mxu0 0
    %170 = vmatpush.bf16.msra.mxu0 0
    %171 = vmatpush.bf16.msra.mxu0 0
    %172 = vmatpush.bf16.msra.mxu0 0
    %173 = vmatpush.bf16.msra.mxu0 0
    %174 = vmatpush.bf16.msra.mxu0 0
    %175 = vmatpush.bf16.msra.mxu0 %v166
    %176 = vmatmul.bf16.gmra.mxu0 %v159
    %v177 = vpop.f32.mrf.mxu0
    %v178 = vadd.f32 %v155, %v177
    %v179 = vpop.f32.mrf.mxu0
    %180 = vdwg.mxu0
    %v181 = vmax.f32 %v178, 0.0
    %v182 = vpack.c.bf16 %v181, %v181
    %v183 = vld [vmem:[%s7] sm:$0x7]
    %v184 = vld [vmem:[%s8] sm:$0x1f]
    %186 = vset.pattern.permute.xlu0 0
    %187 = vperm.xlu0 %186, %v184
    %v188 = vpop.permute.xlu0 %187
    %v191 = vsel %vm157, %v183, 0
    %v194 = vand.u32 %v182, %v164
    %196 = vmatpush.bf16.msra.mxu0 0
    %197 = vmatpush.bf16.msra.mxu0 0
    %198 = vmatpush.bf16.msra.mxu0 0
    %199 = vmatpush.bf16.msra.mxu0 0
    %200 = vmatpush.bf16.msra.mxu0 0
    %201 = vmatpush.bf16.msra.mxu0 0
    %202 = vmatpush.bf16.msra.mxu0 0
    %203 = vmatpush.bf16.msra.mxu0 %v194
    %204 = vmatmul.bf16.gmra.mxu0 %v191
    %v205 = vpop.f32.mrf.mxu0
    %v206 = vadd.f32 %v188, %v205
    %v207 = vpop.f32.mrf.mxu0
    %208 = vdwg.mxu0
    %v209 = vmax.f32 %v206, 0.0
    %v210 = vpack.c.bf16 %v209, %v209
    %v211 = vld [vmem:[%s9] sm:$0x1]
    %v212 = vld [vmem:[#allocation2] sm:$0x1]
    %214 = vset.pattern.permute.xlu0 0
    %215 = vperm.xlu0 %214, %v212
    %v216 = vpop.permute.xlu0 %215
    %v218 = vperm.slane %v216, 0
    %v220 = vsel %vm157, %v211, 0
    %v223 = vand.u32 %v210, %v164
    %225 = vmatpush.bf16.msra.mxu0 0
    %226 = vmatpush.bf16.msra.mxu0 0
    %227 = vmatpush.bf16.msra.mxu0 0
    %228 = vmatpush.bf16.msra.mxu0 0
    %229 = vmatpush.bf16.msra.mxu0 0
    %230 = vmatpush.bf16.msra.mxu0 0
    %231 = vmatpush.bf16.msra.mxu0 0
    %232 = vmatpush.bf16.msra.mxu0 %v223
    %233 = vmatmul.bf16.gmra.mxu0 %v220
    %v234 = vpop.f32.mrf.mxu0
    %v235 = vadd.f32 %v218, %v234
    %v236 = vpop.f32.mrf.mxu0
    %237 = vdwg.mxu0
    %238 = vst [vmem:[#allocation3] sm:$0x1] %v235
    // Predicated region
    $region46: #{tpu_custom_call.1} parent=1 // pred_check
      _
    $region47: #{tpu_custom_call.1} parent=1 // pred_check_branch
      %240 = sbr.rel (0) target = $region49
    $region48: #{tpu_custom_call.1} parent=1 // pred_region
      %242 = vsyncadd [#allocation4], 0
      %s244 = sshll.u32 [#allocation3], 4
      %s245 = int_to_ptr.vmem [resolvable:$true] %s244
      %s246 = sshll.u32 %s11, 4
      %s247 = int_to_ptr.hbm [resolvable:$true] %s246
      %249 = dma.vmem_to_hbm [thread:$0]  %s245, 16, %s247, [#allocation4]
    $region49: #{tpu_custom_call.1} parent=1 // pred_fallthru
      _
    // Predicated region
    $region50: #{tpu_custom_call.1} parent=1 // pred_check
      _
    $region51: #{tpu_custom_call.1} parent=1 // pred_check_branch
      %251 = sbr.rel (0) target = $region53
    $region52: #{tpu_custom_call.1} parent=1 // pred_region
      %253 = dma.done [#allocation4], 16
    $region53: #{tpu_custom_call.1} parent=1 // pred_fallthru
      _
    %254 = vsyncpa [#allocation4], 1

</llo_original>
